<compile_context>
chip_gen: v7x
topology: tpu7x:2x2x1
jax: 0.10.0
libtpu: 0.0.40
codegen_flags: <defaults>
</compile_context>

<pallas_src>
import jax
import jax.numpy as jnp
from jax.experimental import pallas as pl
from jax.experimental.pallas import tpu as pltpu

TILE = 128          # dst/src node tile; MXU-aligned on v5e/v6e/v7x
NEG_BIG = -1e30     # additive mask bias for non-edges


# ---------------------------------------------------------------------------
# Kernel A: GAT linear transform + attention scalars.
#   h  = x @ W_gat                     (bf16 MXU, f32 accumulate)
#   ad = h @ [a_dst | a_src]           (N, 2): col 0 = a_dst.h_i, col 1 = a_src.h_j
# ---------------------------------------------------------------------------
def _gat_linear_kernel(x_ref, w_ref, att_ref, h_ref, ad_ref):
    h = jnp.dot(x_ref[...], w_ref[...], preferred_element_type=jnp.float32)
    h_ref[...] = h.astype(h_ref.dtype)
    # Attention reductions as one tiny MXU matmul (keeps XLU/VPU slots free).
    ad_ref[...] = jnp.dot(h, att_ref[...], preferred_element_type=jnp.float32)


# ---------------------------------------------------------------------------
# Kernel B: online masked softmax over src tiles + aggregation + projection MLP.
# grid = (dst_tiles [parallel], src_tiles [arbitrary / reduction])
# h is VMEM-resident (constant block index); the src tile is sliced in-kernel.
# ---------------------------------------------------------------------------
def _attn_proj_kernel(adst_ref, asrc_ref, bias_ref, h_ref,
                      bgat_ref, w1_ref, b1_ref, w2_ref, b2_ref,
                      out_ref, m_scr, l_scr, acc_scr):
    j = pl.program_id(1)

    @pl.when(j == 0)
    def _():
        m_scr[...] = jnp.full_like(m_scr, -jnp.inf)
        l_scr[...] = jnp.zeros_like(l_scr)
        acc_scr[...] = jnp.zeros_like(acc_scr)

    # e[i, j] = LeakyReLU(a_dst.h_i + a_src.h_j) + mask_bias  (f32 math)
    s = adst_ref[...] + asrc_ref[...]                # (TILE, TILE) via broadcast
    s = jnp.where(s > 0, s, 0.2 * s)                 # LeakyReLU(0.2), PyG default
    s = s + bias_ref[...].astype(jnp.float32)        # 0 for edges, -1e30 otherwise

    # Src tile of the resident transformed features (aligned dynamic slice).
    src0 = pl.multiple_of(j * TILE, TILE)
    h_blk = h_ref[pl.ds(src0, TILE), :]              # (TILE, Cout) bf16

    # Online softmax: running max / denom / accumulator, never the full (N, N).
    m_prev = m_scr[...]
    m_new = jnp.maximum(m_prev, jnp.max(s, axis=-1, keepdims=True))
    corr = jnp.exp(m_prev - m_new)
    p = jnp.exp(s - m_new)                           # unnormalized probabilities
    l_scr[...] = corr * l_scr[...] + jnp.sum(p, axis=-1, keepdims=True)
    acc_scr[...] = corr * acc_scr[...] + jnp.dot(
        p.astype(h_blk.dtype), h_blk, preferred_element_type=jnp.float32)
    m_scr[...] = m_new

    @pl.when(j == pl.num_programs(1) - 1)
    def _():
        inv_l = pl.reciprocal(l_scr[...], approx=True)     # EUP, one rescale
        agg = acc_scr[...] * inv_l + bgat_ref[...]         # GAT output + bias
        z = jnp.dot(agg.astype(jnp.bfloat16), w1_ref[...],
                    preferred_element_type=jnp.float32) + b1_ref[...]
        z = jnp.maximum(z, 0.0)
        out = jnp.dot(z.astype(jnp.bfloat16), w2_ref[...],
                      preferred_element_type=jnp.float32) + b2_ref[...]
        out_ref[...] = out.astype(out_ref.dtype)


def answer_generator_forward(x, mask, params):
    """x: (N, Cin) node features, mask: (N, N) dense adjacency (dst, src)."""
    N, Cin = x.shape
    Cout = params["wgat"].shape[1]
    D = params["w2"].shape[1]

    # Pad nodes to a multiple of TILE so every block is (8,128)/MXU aligned.
    Np = ((N + TILE - 1) // TILE) * TILE
    pad = Np - N
    xp = jnp.pad(x, ((0, pad), (0, 0))).astype(jnp.bfloat16)
    maskp = jnp.pad(mask, ((0, pad), (0, pad)))
    # Additive mask bias in bf16: halves the dominant (N, N) HBM read and
    # replaces compare+select with a single add in the kernel.  Padded
    # rows/cols become non-edges and are sliced off at the end.
    bias = jnp.where(maskp > 0, 0.0, NEG_BIG).astype(jnp.bfloat16)

    wgat_bf = params["wgat"].astype(jnp.bfloat16)
    # att columns: 0 -> a_dst, 1 -> a_src (pre-packed so no in-kernel transpose)
    att = jnp.concatenate([params["att_dst"].T, params["att_src"].T], axis=1)

    n_tiles = Np // TILE

    cost_a = pl.CostEstimate(
        flops=2 * Np * Cin * Cout + 4 * Np * Cout,
        transcendentals=0,
        bytes_accessed=Np * Cin * 2 + Cin * Cout * 2 + Np * Cout * 2 + Np * 2 * 4,
    )

    h_bf, ad = pl.pallas_call(
        _gat_linear_kernel,
        out_shape=(jax.ShapeDtypeStruct((Np, Cout), jnp.bfloat16),
                   jax.ShapeDtypeStruct((Np, 2), jnp.float32)),
        grid_spec=pltpu.PrefetchScalarGridSpec(
            num_scalar_prefetch=0,
            grid=(n_tiles,),
            in_specs=[pl.BlockSpec((TILE, Cin), lambda i: (i, 0)),
                      pl.BlockSpec((Cin, Cout), lambda i: (0, 0)),
                      pl.BlockSpec((Cout, 2), lambda i: (0, 0))],
            out_specs=(pl.BlockSpec((TILE, Cout), lambda i: (i, 0)),
                       pl.BlockSpec((TILE, 2), lambda i: (i, 0)))),
        compiler_params=pltpu.CompilerParams(
            dimension_semantics=("parallel",)),
        cost_estimate=cost_a,
    )(xp, wgat_bf, att)

    a_dst = ad[:, 0:1]                    # (Np, 1) per-target attention term
    a_src_t = ad[:, 1].reshape(1, Np)     # (1, Np) per-source term, pre-transposed

    cost_b = pl.CostEstimate(
        flops=2 * Np * Np * Cout + 8 * Np * Np + 2 * Np * Cout * D + 2 * Np * D * D,
        transcendentals=Np * Np + Np,
        bytes_accessed=(Np * Np * 2          # mask bias (bf16, read once)
                        + Np * Cout * 2      # h (bf16, resident, read once)
                        + Np * D * 4         # output
                        + Cout * D * 2 + D * D * 2 + (Cout + 2 * D) * 4),
    )

    out = pl.pallas_call(
        _attn_proj_kernel,
        out_shape=jax.ShapeDtypeStruct((Np, D), jnp.float32),
        grid_spec=pltpu.PrefetchScalarGridSpec(
            num_scalar_prefetch=0,
            grid=(n_tiles, n_tiles),
            in_specs=[
                pl.BlockSpec((TILE, 1), lambda i, j: (i, 0)),       # a_dst (dst tile)
                pl.BlockSpec((1, TILE), lambda i, j: (0, j)),       # a_src (src tile, row)
                pl.BlockSpec((TILE, TILE), lambda i, j: (i, j)),    # mask bias (bf16)
                pl.BlockSpec((Np, Cout), lambda i, j: (0, 0)),      # h (bf16, VMEM-resident)
                pl.BlockSpec((1, Cout), lambda i, j: (0, 0)),       # bgat (resident)
                pl.BlockSpec((Cout, D), lambda i, j: (0, 0)),       # w1 (bf16, resident)
                pl.BlockSpec((1, D), lambda i, j: (0, 0)),          # b1
                pl.BlockSpec((D, D), lambda i, j: (0, 0)),          # w2 (bf16, resident)
                pl.BlockSpec((1, D), lambda i, j: (0, 0)),          # b2
            ],
            out_specs=pl.BlockSpec((TILE, D), lambda i, j: (i, 0)),
            scratch_shapes=[pltpu.VMEM((TILE, 1), jnp.float32),     # running max
                            pltpu.VMEM((TILE, 1), jnp.float32),     # running denom
                            pltpu.VMEM((TILE, Cout), jnp.float32)]),# accumulator
        compiler_params=pltpu.CompilerParams(
            dimension_semantics=("parallel", "arbitrary"),
            vmem_limit_bytes=48 * 1024 * 1024),
        cost_estimate=cost_b,
    )(a_dst, a_src_t, bias, h_bf,
      params["bgat"], params["w1"].astype(jnp.bfloat16), params["b1"],
      params["w2"].astype(jnp.bfloat16), params["b2"])

    return out[:N]


def init_params(key, in_channels, out_channels, proj_dim):
    ks = jax.random.split(key, 7)
    s = lambda fan_in: 1.0 / jnp.sqrt(jnp.float32(fan_in))
    return {
        "wgat":    jax.random.normal(ks[0], (in_channels, out_channels), jnp.float32) * s(in_channels),
        "att_src": jax.random.normal(ks[1], (1, out_channels), jnp.float32) * s(out_channels),
        "att_dst": jax.random.normal(ks[2], (1, out_channels), jnp.float32) * s(out_channels),
        "bgat":    jnp.zeros((1, out_channels), jnp.float32),
        "w1":      jax.random.normal(ks[3], (out_channels, proj_dim), jnp.float32) * s(out_channels),
        "b1":      jax.random.normal(ks[4], (1, proj_dim), jnp.float32) * 0.01,
        "w2":      jax.random.normal(ks[5], (proj_dim, proj_dim), jnp.float32) * s(proj_dim),
        "b2":      jax.random.normal(ks[6], (1, proj_dim), jnp.float32) * 0.01,
    }


def reference_forward(x, mask, p):
    """Pure-JAX f32 reference for verification."""
    h = x @ p["wgat"]
    a_src = jnp.sum(h * p["att_src"], axis=-1, keepdims=True)
    a_dst = jnp.sum(h * p["att_dst"], axis=-1, keepdims=True)
    scores = a_dst + a_src.T
    scores = jnp.where(scores > 0, scores, 0.2 * scores)
    scores = jnp.where(mask > 0, scores, -1e30)
    alpha = jax.nn.softmax(scores, axis=-1)
    agg = alpha @ h + p["bgat"]
    z = jnp.maximum(agg @ p["w1"] + p["b1"], 0.0)
    return z @ p["w2"] + p["b2"]


if __name__ == "__main__":
    # Small but tiling-exercising shapes (module defaults are in=128, out=256,
    # proj=768; scaled down). N=200 pads to 256 -> a 2x2 tile grid.
    N = 200           # number of graph nodes
    E = 512           # number of directed edges
    IN_CH = 128       # GATConv in_channels
    OUT_CH = 128      # GATConv out_channels
    PROJ = 256        # projection dim

    key = jax.random.PRNGKey(0)
    k_x, k_src, k_dst, k_p = jax.random.split(key, 4)

    x = jax.random.normal(k_x, (N, IN_CH), jnp.float32)

    # Deterministic random edge_index (source -> target), plus self-loops
    # (GATConv default), densified into an (N_dst, N_src) mask.
    src = jax.random.randint(k_src, (E,), 0, N)
    dst = jax.random.randint(k_dst, (E,), 0, N)
    mask = jnp.zeros((N, N), jnp.float32)
    mask = mask.at[dst, src].set(1.0)
    mask = mask.at[jnp.arange(N), jnp.arange(N)].set(1.0)

    params = init_params(k_p, IN_CH, OUT_CH, PROJ)

    out = jax.block_until_ready(answer_generator_forward(x, mask, params))
    ref = reference_forward(x, mask, params)

    assert out.shape == (N, PROJ)
    max_err = float(jnp.max(jnp.abs(out - ref)))
    scale = float(jnp.max(jnp.abs(ref)))
    assert max_err < 0.1 * scale + 1e-3, (
        f"mismatch vs pure-JAX reference: max_err={max_err}, scale={scale}")

    print("KERNEL_OK")
</pallas_src>

<mosaic_0001>
module attributes {stable_mosaic.version = 11 : i64} {
  func.func @_gat_linear_kernel(%arg0: i32, %arg1: memref<128x128xbf16, #tpu.memory_space<vmem>>, %arg2: memref<128x128xbf16, #tpu.memory_space<vmem>>, %arg3: memref<128x2xf32, #tpu.memory_space<vmem>>, %arg4: memref<128x128xbf16, #tpu.memory_space<vmem>>, %arg5: memref<128x2xf32, #tpu.memory_space<vmem>>) attributes {dimension_semantics = [#tpu.dimension_semantics<parallel>], iteration_bounds = array<i64: 2>, scalar_prefetch = 0 : i64, scratch_operands = 0 : i64, tpu.core_type = #tpu.core_type<tc>, window_params = [{transform_indices = @transform_0, window_bounds = array<i64: 128, 128>}, {pipeline_mode = #tpu.pipeline_mode<synchronous>, transform_indices = @transform_1, window_bounds = array<i64: 128, 128>}, {pipeline_mode = #tpu.pipeline_mode<synchronous>, transform_indices = @transform_2, window_bounds = array<i64: 128, 2>}, {transform_indices = @transform_3, window_bounds = array<i64: 128, 128>}, {transform_indices = @transform_4, window_bounds = array<i64: 128, 2>}]} {
    %c0 = arith.constant 0 : index
    %c0_0 = arith.constant 0 : index
    %0 = vector.load %arg1[%c0, %c0_0] : memref<128x128xbf16, #tpu.memory_space<vmem>>, vector<128x128xbf16>
    %c0_1 = arith.constant 0 : index
    %c0_2 = arith.constant 0 : index
    %1 = vector.load %arg2[%c0_1, %c0_2] : memref<128x128xbf16, #tpu.memory_space<vmem>>, vector<128x128xbf16>
    %cst = arith.constant dense<0.000000e+00> : vector<128x128xf32>
    %2 = tpu.matmul %0, %1, %cst {dimension_numbers = #tpu.dot_dimension_numbers<[1], [0], [0], [1], [0, 0, 1, 1], [], []>} : vector<128x128xbf16>, vector<128x128xbf16>, vector<128x128xf32> -> vector<128x128xf32>
    %3 = arith.truncf %2 : vector<128x128xf32> to vector<128x128xbf16>
    %c0_3 = arith.constant 0 : index
    %c0_4 = arith.constant 0 : index
    %4 = vector.load %arg4[%c0_3, %c0_4] : memref<128x128xbf16, #tpu.memory_space<vmem>>, vector<128x128xbf16>
    tpu.vector_store %arg4[%c0_3, %c0_4], %3 {strides = array<i32>} : memref<128x128xbf16, #tpu.memory_space<vmem>>, vector<128x128xbf16>,
    %c0_5 = arith.constant 0 : index
    %c0_6 = arith.constant 0 : index
    %5 = vector.load %arg3[%c0_5, %c0_6] : memref<128x2xf32, #tpu.memory_space<vmem>>, vector<128x2xf32>
    %cst_7 = arith.constant dense<0.000000e+00> : vector<128x2xf32>
    %6 = tpu.matmul %2, %5, %cst_7 {dimension_numbers = #tpu.dot_dimension_numbers<[1], [0], [0], [1], [0, 0, 1, 1], [], []>} : vector<128x128xf32>, vector<128x2xf32>, vector<128x2xf32> -> vector<128x2xf32>
    %c0_8 = arith.constant 0 : index
    %c0_9 = arith.constant 0 : index
    %7 = vector.load %arg5[%c0_8, %c0_9] : memref<128x2xf32, #tpu.memory_space<vmem>>, vector<128x2xf32>
    tpu.vector_store %arg5[%c0_8, %c0_9], %6 {strides = array<i32>} : memref<128x2xf32, #tpu.memory_space<vmem>>, vector<128x2xf32>,
    return
  }
  func.func @transform_0(%arg0: i32) -> (i32, i32) {
    %c0_i32 = arith.constant 0 : i32
    %c0_i32_0 = arith.constant 0 : i32
    return %arg0, %c0_i32 : i32, i32
  }
  func.func @transform_1(%arg0: i32) -> (i32, i32) {
    %c0_i32 = arith.constant 0 : i32
    %c0_i32_0 = arith.constant 0 : i32
    %c0_i32_1 = arith.constant 0 : i32
    return %c0_i32, %c0_i32_0 : i32, i32
  }
  func.func @transform_2(%arg0: i32) -> (i32, i32) {
    %c0_i32 = arith.constant 0 : i32
    %c0_i32_0 = arith.constant 0 : i32
    %c0_i32_1 = arith.constant 0 : i32
    return %c0_i32, %c0_i32_0 : i32, i32
  }
  func.func @transform_3(%arg0: i32) -> (i32, i32) {
    %c0_i32 = arith.constant 0 : i32
    %c0_i32_0 = arith.constant 0 : i32
    return %arg0, %c0_i32 : i32, i32
  }
  func.func @transform_4(%arg0: i32) -> (i32, i32) {
    %c0_i32 = arith.constant 0 : i32
    %c0_i32_0 = arith.constant 0 : i32
    return %arg0, %c0_i32 : i32, i32
  }
}

</mosaic_0001>

<llo_original>
// kernel: tpu_custom_call.1
$region0: #{tpu_custom_call.1}
  #allocation0 [shape = 'u32[]', space=smem, size = 0x4, offset = 0x4, fixed_abs, tag = 'smem constant byte address 0x4 - core index']
  #allocation1 [shape = 'u32[144,128]{1,0:T(1,128)}', space=vmem, size = 0x12000, scoped, tag = 'internal scratch']
  %s0 = inlined_call_operand.vmem [shape: bf16[256,128], index: 0, kind: input, shape index: {}]
  %s1 = inlined_call_operand.hbm [shape: bf16[128,128], index: 1, kind: input, shape index: {}]
  %s2 = inlined_call_operand.vmem [shape: f32[128,2], index: 2, kind: input, shape index: {}]
  %s3 = inlined_call_operand.hbm [shape: bf16[256,128], index: 3, kind: output, shape index: {0}]
  %s4 = inlined_call_operand.vmem [shape: f32[256,2], index: 4, kind: output, shape index: {1}]
  %5 = xla_tuple %s3, %s4
  %s6 = sld [smem:[#allocation0]]
  $region57: #{tpu_custom_call.1} parent=0
    _
  %s8 = ssub.s32 1, %s6
  %s9 = scalar_select 0, %s8, %s6
  $region1: #{tpu_custom_call.1} parent=0
    #allocation2 [shape = 'u8[32768]{0}', space=vmem, size = 0x8000, scoped, tag = 'input window, operand 1, single buffered']
    #allocation3 [shape = 's32[2]{0}', space=sflag, size = 0x8, scoped, tag = 'scoped memory for tpu_custom_call.1']
    #allocation4 [shape = 's32[2]{0}', space=sflag, size = 0x8, scoped, tag = 'scoped memory for tpu_custom_call.1']
    #allocation5 [shape = 'u8[65536]{0}', space=vmem, size = 0x10000, scoped, tag = 'output window, operand 0']
    %10 = vsyncpa [#allocation3], 0
    %11 = vsyncpa [#allocation4], 0
    %s12 = scalar_lea.sflag [#allocation4], 1
    %13 = vsyncpa %s12, 0
    loop: start=0, step=1, limit=4
    $region2: #{tpu_custom_call.1} parent=1 // loop_pre_header
      _
    $region3: #{tpu_custom_call.1} parent=1 // loop_header
      %s15 = sphi 0, %s19
      %p16 = scmp.ge.s32.totalorder %s15, 4
      %s25 = sphi 0, %s27
      %s28 = sphi 0, %s25
      %s29 = sphi 0, %s28
      %s45 = sphi 0, %s29
      %s49 = sphi 0, %s49
      %s51 = sphi 0, %s49
      %s52 = sphi 0, %s51
      %s66 = sphi 0, %s52
      %s70 = sphi 0, %s70
      %s72 = sphi 0, %s70
      %s73 = sphi 0, %s72
      %s87 = sphi 0, %s73
      %s93 = sphi 0, %s95
      %s96 = sphi 0, %s93
      %s97 = sphi 0, %s96
      %s113 = sphi 0, %s97
      %s119 = sphi 0, %s121
      %s122 = sphi 0, %s119
      %s123 = sphi 0, %s122
      %s139 = sphi 0, %s123
    $region4: #{tpu_custom_call.1} parent=1 // loop_header_branch
      %18 = sbr.rel (%p16) target = $region8
    $region5: #{tpu_custom_call.1} parent=1 // loop_body
      %s20 = ssub.s32 %s15, 1
      %s21 = ssub.s32 %s15, 2
      %s22 = sadd.s32 %s15, 1
      %s23 = ssub.s32 %s15, %s22
      %p24 = scmp.eq.s32.totalorder %s23, 0
      %s26 = sadd.s32 %s25, 1
      %s27 = scalar_select %p24, %s25, %s26
      %p30 = pneg %p24
      %p31 = scmp.eq.s32.totalorder %s15, 1
      %p32 = por %p30, %p31
      %p33 = scmp.ne.s32.totalorder %s25, %s28
      %p34 = scmp.eq.s32.totalorder %s15, 0
      %p35 = por %p33, %p34
      %p36 = scmp.ne.s32.totalorder %s25, %s28
      %p37 = scmp.eq.s32.totalorder %s20, 1
      %p38 = por %p36, %p37
      %p39 = scmp.ne.s32.totalorder %s28, %s29
      %p40 = scmp.eq.s32.totalorder %s20, 0
      %p41 = por %p39, %p40
      %p42 = scmp.ne.s32.totalorder %s28, %s29
      %p43 = scmp.eq.s32.totalorder %s21, 1
      %p44 = por %p42, %p43
      %p46 = scmp.ne.s32.totalorder %s29, %s45
      %p47 = scmp.eq.s32.totalorder %s21, 0
      %p48 = por %p46, %p47
      %s50 = sadd.s32 %s49, 1
      %p53 = scmp.eq.s32.totalorder %s15, 1
      %p54 = scmp.ne.s32.totalorder %s49, %s51
      %p55 = scmp.eq.s32.totalorder %s15, 0
      %p56 = por %p54, %p55
      %p57 = scmp.ne.s32.totalorder %s49, %s51
      %p58 = scmp.eq.s32.totalorder %s20, 1
      %p59 = por %p57, %p58
      %p60 = scmp.ne.s32.totalorder %s51, %s52
      %p61 = scmp.eq.s32.totalorder %s20, 0
      %p62 = por %p60, %p61
      %p63 = scmp.ne.s32.totalorder %s51, %s52
      %p64 = scmp.eq.s32.totalorder %s21, 1
      %p65 = por %p63, %p64
      %p67 = scmp.ne.s32.totalorder %s52, %s66
      %p68 = scmp.eq.s32.totalorder %s21, 0
      %p69 = por %p67, %p68
      %s71 = sadd.s32 %s70, 1
      %p74 = scmp.eq.s32.totalorder %s15, 1
      %p75 = scmp.ne.s32.totalorder %s70, %s72
      %p76 = scmp.eq.s32.totalorder %s15, 0
      %p77 = por %p75, %p76
      %p78 = scmp.ne.s32.totalorder %s70, %s72
      %p79 = scmp.eq.s32.totalorder %s20, 1
      %p80 = por %p78, %p79
      %p81 = scmp.ne.s32.totalorder %s72, %s73
      %p82 = scmp.eq.s32.totalorder %s20, 0
      %p83 = por %p81, %p82
      %p84 = scmp.ne.s32.totalorder %s72, %s73
      %p85 = scmp.eq.s32.totalorder %s21, 1
      %p86 = por %p84, %p85
      %p88 = scmp.ne.s32.totalorder %s73, %s87
      %p89 = scmp.eq.s32.totalorder %s21, 0
      %p90 = por %p88, %p89
      %s91 = ssub.s32 %s15, %s22
      %p92 = scmp.eq.s32.totalorder %s91, 0
      %s94 = sadd.s32 %s93, 1
      %s95 = scalar_select %p92, %s93, %s94
      %p98 = pneg %p92
      %p99 = scmp.eq.s32.totalorder %s15, 1
      %p100 = por %p98, %p99
      %p101 = scmp.ne.s32.totalorder %s93, %s96
      %p102 = scmp.eq.s32.totalorder %s15, 0
      %p103 = por %p101, %p102
      %p104 = scmp.ne.s32.totalorder %s93, %s96
      %p105 = scmp.eq.s32.totalorder %s20, 1
      %p106 = por %p104, %p105
      %p107 = scmp.ne.s32.totalorder %s96, %s97
      %p108 = scmp.eq.s32.totalorder %s20, 0
      %p109 = por %p107, %p108
      %p110 = scmp.ne.s32.totalorder %s96, %s97
      %p111 = scmp.eq.s32.totalorder %s21, 1
      %p112 = por %p110, %p111
      %p114 = scmp.ne.s32.totalorder %s97, %s113
      %p115 = scmp.eq.s32.totalorder %s21, 0
      %p116 = por %p114, %p115
      %s117 = ssub.s32 %s15, %s22
      %p118 = scmp.eq.s32.totalorder %s117, 0
      %s120 = sadd.s32 %s119, 1
      %s121 = scalar_select %p118, %s119, %s120
      %p124 = pneg %p118
      %p125 = scmp.eq.s32.totalorder %s15, 1
      %p126 = por %p124, %p125
      %p127 = scmp.ne.s32.totalorder %s119, %s122
      %p128 = scmp.eq.s32.totalorder %s15, 0
      %p129 = por %p127, %p128
      %p130 = scmp.ne.s32.totalorder %s119, %s122
      %p131 = scmp.eq.s32.totalorder %s20, 1
      %p132 = por %p130, %p131
      %p133 = scmp.ne.s32.totalorder %s122, %s123
      %p134 = scmp.eq.s32.totalorder %s20, 0
      %p135 = por %p133, %p134
      %p136 = scmp.ne.s32.totalorder %s122, %s123
      %p137 = scmp.eq.s32.totalorder %s21, 1
      %p138 = por %p136, %p137
      %p140 = scmp.ne.s32.totalorder %s123, %s139
      %p141 = scmp.eq.s32.totalorder %s21, 0
      %p142 = por %p140, %p141
      %p143 = scmp.le.s32.totalorder 1, %s15
      %p144 = scmp.lt.s32.totalorder %s15, 3
      %p145 = pnand %p143, %p144
      %p146 = pneg %p145
      // Predicated region
      $region9: #{tpu_custom_call.1} parent=5 // pred_check
        _
      $region10: #{tpu_custom_call.1} parent=5 // pred_check_branch
        %148 = sbr.rel (%p145) target = $region12
      $region11: #{tpu_custom_call.1} parent=5 // pred_region
        %s149 = ssub.s32 %s15, 1
        // Predicated region
        $region13: #{tpu_custom_call.1} parent=11 // pred_check
          %p150 = pneg %p62
        $region14: #{tpu_custom_call.1} parent=11 // pred_check_branch
          %152 = sbr.rel (%p150) target = $region16
        $region15: #{tpu_custom_call.1} parent=11 // pred_region
          %s154 = ssub.s32 1024, 1024
          %155 = vsyncadd [#allocation3], %s154
          %s156 = sshll.u32 [#allocation2], 4
          %s157 = int_to_ptr.vmem [resolvable:$true] %s156
          %162 = dma.hbm_to_vmem [thread:$0]  %s1, 1024, %s157, [#allocation3], 64, 64, 4
        $region16: #{tpu_custom_call.1} parent=11 // pred_fallthru
          _
        // Predicated region
        $region17: #{tpu_custom_call.1} parent=11 // pred_check
          %p163 = pneg %p83
        $region18: #{tpu_custom_call.1} parent=11 // pred_check_branch
          %165 = sbr.rel (%p163) target = $region20
        $region19: #{tpu_custom_call.1} parent=11 // pred_region
          _
        $region20: #{tpu_custom_call.1} parent=11 // pred_fallthru
          _
      $region12: #{tpu_custom_call.1} parent=5 // pred_fallthru
        _
      %p166 = scmp.lt.s32.totalorder %s15, 2
      // Predicated region
      $region21: #{tpu_custom_call.1} parent=5 // pred_check
        %p167 = pneg %p166
      $region22: #{tpu_custom_call.1} parent=5 // pred_check_branch
        %169 = sbr.rel (%p167) target = $region24
      $region23: #{tpu_custom_call.1} parent=5 // pred_region
        // Predicated region
        $region25: #{tpu_custom_call.1} parent=23 // pred_check
          %p170 = pneg %p35
        $region26: #{tpu_custom_call.1} parent=23 // pred_check_branch
          %172 = sbr.rel (%p170) target = $region28
        $region27: #{tpu_custom_call.1} parent=23 // pred_region
          %s173 = smul.u32 16, %s15
          %p174 = scmp.lt.s32.totalorder %s173, 31
          %s175 = scalar_select %p174, %s173, 31
          %s176 = smul.addr %s175, 4
          %s177 = scalar_lea.vmem %s0, %s176
          %s178 = smul.u32 16, %s15
        $region28: #{tpu_custom_call.1} parent=23 // pred_fallthru
          _
      $region24: #{tpu_custom_call.1} parent=5 // pred_fallthru
        _
      %p179 = scmp.le.s32.totalorder 1, %s15
      %p180 = scmp.lt.s32.totalorder %s15, 3
      %p181 = pnand %p179, %p180
      %p182 = pneg %p181
      // Predicated region
      $region29: #{tpu_custom_call.1} parent=5 // pred_check
        _
      $region30: #{tpu_custom_call.1} parent=5 // pred_check_branch
        %184 = sbr.rel (%p181) target = $region32
      $region31: #{tpu_custom_call.1} parent=5 // pred_region
        %s185 = ssub.s32 %s15, 1
        // Predicated region
        $region33: #{tpu_custom_call.1} parent=31 // pred_check
          %p186 = pneg %p62
        $region34: #{tpu_custom_call.1} parent=31 // pred_check_branch
          %188 = sbr.rel (%p186) target = $region36
        $region35: #{tpu_custom_call.1} parent=31 // pred_region
          %189 = dma.done [#allocation3], 1024
        $region36: #{tpu_custom_call.1} parent=31 // pred_fallthru
          _
        %s190 = smul.u32 16, %s20
        %p191 = scmp.lt.s32.totalorder %s190, 31
        %s192 = scalar_select %p191, %s190, 31
        %s193 = smul.addr %s192, 4
        %s194 = scalar_lea.vmem %s0, %s193
        %p195 = pneg %p41
        %p196 = pneg %p38
        %p197 = pneg %p62
        %p198 = pneg %p59
        %p199 = pneg %p83
        %p200 = pneg %p80
        %p201 = pneg %p109
        %p202 = pneg %p106
        %s203 = sand.u32 %s96, 1
        %s204 = scalar_lea.sflag [#allocation4], %s203
        %s205 = sand.u32 %s96, 1
        %s206 = smul.addr %s205, 64
        %s207 = scalar_lea.vmem [#allocation5], %s206
        %p208 = pneg %p135
        %p209 = pneg %p132
        %s210 = smul.u32 16, %s20
        %p211 = scmp.lt.s32.totalorder %s210, 31
        %s212 = scalar_select %p211, %s210, 31
        %s213 = smul.addr %s212, 8
        %s214 = scalar_lea.vmem %s4, %s213
        %s215 = smul.u32 16, %s20
        %p216 = scmp.lt.s32.totalorder %s215, 31
        %s217 = scalar_select %p216, %s215, 31
        %s218 = smul.addr %s217, 4
        %s219 = scalar_lea.vmem %s0, %s218
        %s220 = smul.u32 16, %s20
        %s221 = smul.u32 16, %s20
        %s222 = smul.u32 16, %s20
        %p223 = scmp.lt.s32.totalorder %s222, 31
        %s224 = scalar_select %p223, %s222, 31
        %s225 = smul.addr %s224, 8
        %s226 = scalar_lea.vmem %s4, %s225
        %s227 = smul.u32 16, %s20
        %v229 = vld [vmem:[%s219] sm:$0xf]
        %v230 = vld [vmem:[%s219 + $0x4] sm:$0xf]
        %v231 = vld [vmem:[%s219 + $0x8] sm:$0xf]
        %v232 = vld [vmem:[%s219 + $0xc] sm:$0xf]
        %v233 = vld [vmem:[%s219 + $0x10] sm:$0xf]
        %v234 = vld [vmem:[%s219 + $0x14] sm:$0xf]
        %v235 = vld [vmem:[%s219 + $0x18] sm:$0xf]
        %v236 = vld [vmem:[%s219 + $0x1c] sm:$0xf]
        %v237 = vld [vmem:[%s219 + $0x20] sm:$0xf]
        %v238 = vld [vmem:[%s219 + $0x24] sm:$0xf]
        %v239 = vld [vmem:[%s219 + $0x28] sm:$0xf]
        %v240 = vld [vmem:[%s219 + $0x2c] sm:$0xf]
        %v241 = vld [vmem:[%s219 + $0x30] sm:$0xf]
        %v242 = vld [vmem:[%s219 + $0x34] sm:$0xf]
        %v243 = vld [vmem:[%s219 + $0x38] sm:$0xf]
        %v244 = vld [vmem:[%s219 + $0x3c] sm:$0xf]
        %v245 = vld [vmem:[#allocation2] sm:$0xf]
        %v246 = vld [vmem:[#allocation2 + $0x4] sm:$0xf]
        %v247 = vld [vmem:[#allocation2 + $0x8] sm:$0xf]
        %v248 = vld [vmem:[#allocation2 + $0xc] sm:$0xf]
        %v249 = vld [vmem:[#allocation2 + $0x10] sm:$0xf]
        %v250 = vld [vmem:[#allocation2 + $0x14] sm:$0xf]
        %v251 = vld [vmem:[#allocation2 + $0x18] sm:$0xf]
        %v252 = vld [vmem:[#allocation2 + $0x1c] sm:$0xf]
        %v253 = vld [vmem:[#allocation2 + $0x20] sm:$0xf]
        %v254 = vld [vmem:[#allocation2 + $0x24] sm:$0xf]
        %v255 = vld [vmem:[#allocation2 + $0x28] sm:$0xf]
        %v256 = vld [vmem:[#allocation2 + $0x2c] sm:$0xf]
        %v257 = vld [vmem:[#allocation2 + $0x30] sm:$0xf]
        %v258 = vld [vmem:[#allocation2 + $0x34] sm:$0xf]
        %v259 = vld [vmem:[#allocation2 + $0x38] sm:$0xf]
        %v260 = vld [vmem:[#allocation2 + $0x3c] sm:$0xf]
        %v277 = vunpack.c.l.b16 %v229
        %v278 = vunpack.c.l.b16 %v230
        %v279 = vunpack.c.l.b16 %v231
        %v280 = vunpack.c.l.b16 %v232
        %v281 = vunpack.c.l.b16 %v233
        %v282 = vunpack.c.l.b16 %v234
        %v283 = vunpack.c.l.b16 %v235
        %v284 = vunpack.c.l.b16 %v236
        %v285 = vunpack.c.l.b16 %v237
        %v286 = vunpack.c.l.b16 %v238
        %v287 = vunpack.c.l.b16 %v239
        %v288 = vunpack.c.l.b16 %v240
        %v289 = vunpack.c.l.b16 %v241
        %v290 = vunpack.c.l.b16 %v242
        %v291 = vunpack.c.l.b16 %v243
        %v292 = vunpack.c.l.b16 %v244
        %v293 = vpack.c.b16 %v278, %v277
        %v294 = vpack.c.b16 %v280, %v279
        %v295 = vpack.c.b16 %v282, %v281
        %v296 = vpack.c.b16 %v284, %v283
        %v297 = vpack.c.b16 %v286, %v285
        %v298 = vpack.c.b16 %v288, %v287
        %v299 = vpack.c.b16 %v290, %v289
        %v300 = vpack.c.b16 %v292, %v291
        %v325 = vunpack.c.l.b16 %v245
        %v326 = vunpack.c.l.b16 %v246
        %v327 = vunpack.c.l.b16 %v247
        %v328 = vunpack.c.l.b16 %v248
        %v329 = vunpack.c.l.b16 %v249
        %v330 = vunpack.c.l.b16 %v250
        %v331 = vunpack.c.l.b16 %v251
        %v332 = vunpack.c.l.b16 %v252
        %v333 = vunpack.c.l.b16 %v253
        %v334 = vunpack.c.l.b16 %v254
        %v335 = vunpack.c.l.b16 %v255
        %v336 = vunpack.c.l.b16 %v256
        %v337 = vunpack.c.l.b16 %v257
        %v338 = vunpack.c.l.b16 %v258
        %v339 = vunpack.c.l.b16 %v259
        %v340 = vunpack.c.l.b16 %v260
        %v341 = vpack.c.b16 %v326, %v325
        %v342 = vpack.c.b16 %v328, %v327
        %v343 = vpack.c.b16 %v330, %v329
        %v344 = vpack.c.b16 %v332, %v331
        %v345 = vpack.c.b16 %v334, %v333
        %v346 = vpack.c.b16 %v336, %v335
        %v347 = vpack.c.b16 %v338, %v337
        %v348 = vpack.c.b16 %v340, %v339
        %357 = vmatprep.subr.bf16.mxu0 0
        %358 = vmatpush1.bf16.msra.mxu0 %v341
        %359 = vmatprep.subr.bf16.mxu0 0
        %360 = vmatpush1.bf16.msra.mxu0 %v342
        %361 = vmatprep.subr.bf16.mxu0 0
        %362 = vmatpush1.bf16.msra.mxu0 %v343
        %363 = vmatprep.subr.bf16.mxu0 0
        %364 = vmatpush1.bf16.msra.mxu0 %v344
        %365 = vmatprep.subr.bf16.mxu0 0
        %366 = vmatpush1.bf16.msra.mxu0 %v345
        %367 = vmatprep.subr.bf16.mxu0 0
        %368 = vmatpush1.bf16.msra.mxu0 %v346
        %369 = vmatprep.subr.bf16.mxu0 0
        %370 = vmatpush1.bf16.msra.mxu0 %v347
        %371 = vmatprep.subr.bf16.mxu0 0
        %372 = vmatpush1.bf16.msra.mxu0 %v348
        %373 = vmatprep.subr.bf16.mxu0 0
        %374 = vmatpush1.bf16.msra.mxu0 0
        %375 = vmatprep.subr.bf16.mxu0 0
        %376 = vmatpush1.bf16.msra.mxu0 0
        %377 = vmatprep.subr.bf16.mxu0 0
        %378 = vmatpush1.bf16.msra.mxu0 0
        %379 = vmatprep.subr.bf16.mxu0 0
        %380 = vmatpush1.bf16.msra.mxu0 0
        %381 = vmatprep.subr.bf16.mxu0 0
        %382 = vmatpush1.bf16.msra.mxu0 0
        %383 = vmatprep.subr.bf16.mxu0 0
        %384 = vmatpush1.bf16.msra.mxu0 0
        %385 = vmatprep.subr.bf16.mxu0 0
        %386 = vmatpush1.bf16.msra.mxu0 0
        %387 = vmatprep.subr.bf16.mxu0 0
        %388 = vmatpush1.bf16.msra.mxu0 0
        %389 = vmatprep.mubr.bf16.mxu0 0
        %390 = vmatmul.mubr.bf16.gmra.mrb[0].mxu0 %v293
        %v391 = vpop.f32.mrb[0].mxu0
        %v392 = vadd.f32 0.0, %v391
        %v393 = vpop.f32.mrb[0].mxu0
        %v394 = vpop.f32.mrb[0].mxu0
        %v395 = vadd.f32 0.0, %v394
        %v396 = vpop.f32.mrb[0].mxu0
        %397 = vmatprep.mubr.bf16.mxu0 0
        %398 = vmatmul.mubr.bf16.gmra.mrb[0].mxu0 %v294
        %v399 = vpop.f32.mrb[0].mxu0
        %v400 = vadd.f32 0.0, %v399
        %v401 = vpop.f32.mrb[0].mxu0
        %v402 = vpop.f32.mrb[0].mxu0
        %v403 = vadd.f32 0.0, %v402
        %v404 = vpop.f32.mrb[0].mxu0
        %405 = vmatprep.mubr.bf16.mxu0 0
        %406 = vmatmul.mubr.bf16.gmra.mrb[0].mxu0 %v295
        %v407 = vpop.f32.mrb[0].mxu0
        %v408 = vadd.f32 0.0, %v407
        %v409 = vpop.f32.mrb[0].mxu0
        %v410 = vpop.f32.mrb[0].mxu0
        %v411 = vadd.f32 0.0, %v410
        %v412 = vpop.f32.mrb[0].mxu0
        %413 = vmatprep.mubr.bf16.mxu0 0
        %414 = vmatmul.mubr.bf16.gmra.mrb[0].mxu0 %v296
        %v415 = vpop.f32.mrb[0].mxu0
        %v416 = vadd.f32 0.0, %v415
        %v417 = vpop.f32.mrb[0].mxu0
        %v418 = vpop.f32.mrb[0].mxu0
        %v419 = vadd.f32 0.0, %v418
        %v420 = vpop.f32.mrb[0].mxu0
        %421 = vmatprep.mubr.bf16.mxu0 0
        %422 = vmatmul.mubr.bf16.gmra.mrb[0].mxu0 %v297
        %v423 = vpop.f32.mrb[0].mxu0
        %v424 = vadd.f32 0.0, %v423
        %v425 = vpop.f32.mrb[0].mxu0
        %v426 = vpop.f32.mrb[0].mxu0
        %v427 = vadd.f32 0.0, %v426
        %v428 = vpop.f32.mrb[0].mxu0
        %429 = vmatprep.mubr.bf16.mxu0 0
        %430 = vmatmul.mubr.bf16.gmra.mrb[0].mxu0 %v298
        %v431 = vpop.f32.mrb[0].mxu0
        %v432 = vadd.f32 0.0, %v431
        %v433 = vpop.f32.mrb[0].mxu0
        %v434 = vpop.f32.mrb[0].mxu0
        %v435 = vadd.f32 0.0, %v434
        %v436 = vpop.f32.mrb[0].mxu0
        %437 = vmatprep.mubr.bf16.mxu0 0
        %438 = vmatmul.mubr.bf16.gmra.mrb[0].mxu0 %v299
        %v439 = vpop.f32.mrb[0].mxu0
        %v440 = vadd.f32 0.0, %v439
        %v441 = vpop.f32.mrb[0].mxu0
        %v442 = vpop.f32.mrb[0].mxu0
        %v443 = vadd.f32 0.0, %v442
        %v444 = vpop.f32.mrb[0].mxu0
        %445 = vmatprep.mubr.bf16.mxu0 0
        %446 = vmatmul.mubr.bf16.gmra.mrb[0].mxu0 %v300
        %v447 = vpop.f32.mrb[0].mxu0
        %v448 = vadd.f32 0.0, %v447
        %v449 = vpop.f32.mrb[0].mxu0
        %v450 = vpop.f32.mrb[0].mxu0
        %v451 = vadd.f32 0.0, %v450
        %v452 = vpop.f32.mrb[0].mxu0
        %453 = vdwg.mxu0
        %v454 = vpack.c.bf16 %v395, %v392
        %v455 = vpack.c.bf16 %v403, %v400
        %v456 = vpack.c.bf16 %v411, %v408
        %v457 = vpack.c.bf16 %v419, %v416
        %v458 = vpack.c.bf16 %v427, %v424
        %v459 = vpack.c.bf16 %v435, %v432
        %v460 = vpack.c.bf16 %v443, %v440
        %v461 = vpack.c.bf16 %v451, %v448
        %v470 = vunpack.c.l.b16 %v454
        %v471 = vunpack.c.h.b16 %v454
        %v472 = vunpack.c.l.b16 %v455
        %v473 = vunpack.c.h.b16 %v455
        %v474 = vunpack.c.l.b16 %v456
        %v475 = vunpack.c.h.b16 %v456
        %v476 = vunpack.c.l.b16 %v457
        %v477 = vunpack.c.h.b16 %v457
        %v478 = vunpack.c.l.b16 %v458
        %v479 = vunpack.c.h.b16 %v458
        %v480 = vunpack.c.l.b16 %v459
        %v481 = vunpack.c.h.b16 %v459
        %v482 = vunpack.c.l.b16 %v460
        %v483 = vunpack.c.h.b16 %v460
        %v484 = vunpack.c.l.b16 %v461
        %v485 = vunpack.c.h.b16 %v461
        %v486 = vpack.c.b16 %v470, %v470
        %v487 = vpack.c.b16 %v471, %v471
        %v488 = vpack.c.b16 %v472, %v472
        %v489 = vpack.c.b16 %v473, %v473
        %v490 = vpack.c.b16 %v474, %v474
        %v491 = vpack.c.b16 %v475, %v475
        %v492 = vpack.c.b16 %v476, %v476
        %v493 = vpack.c.b16 %v477, %v477
        %v494 = vpack.c.b16 %v478, %v478
        %v495 = vpack.c.b16 %v479, %v479
        %v496 = vpack.c.b16 %v480, %v480
        %v497 = vpack.c.b16 %v481, %v481
        %v498 = vpack.c.b16 %v482, %v482
        %v499 = vpack.c.b16 %v483, %v483
        %v500 = vpack.c.b16 %v484, %v484
        %v501 = vpack.c.b16 %v485, %v485
        %518 = vst [vmem:[%s207] sm:$0xf] %v486
        %519 = vst [vmem:[%s207 + $0x4] sm:$0xf] %v487
        %520 = vst [vmem:[%s207 + $0x8] sm:$0xf] %v488
        %521 = vst [vmem:[%s207 + $0xc] sm:$0xf] %v489
        %522 = vst [vmem:[%s207 + $0x10] sm:$0xf] %v490
        %523 = vst [vmem:[%s207 + $0x14] sm:$0xf] %v491
        %524 = vst [vmem:[%s207 + $0x18] sm:$0xf] %v492
        %525 = vst [vmem:[%s207 + $0x1c] sm:$0xf] %v493
        %526 = vst [vmem:[%s207 + $0x20] sm:$0xf] %v494
        %527 = vst [vmem:[%s207 + $0x24] sm:$0xf] %v495
        %528 = vst [vmem:[%s207 + $0x28] sm:$0xf] %v496
        %529 = vst [vmem:[%s207 + $0x2c] sm:$0xf] %v497
        %530 = vst [vmem:[%s207 + $0x30] sm:$0xf] %v498
        %531 = vst [vmem:[%s207 + $0x34] sm:$0xf] %v499
        %532 = vst [vmem:[%s207 + $0x38] sm:$0xf] %v500
        %533 = vst [vmem:[%s207 + $0x3c] sm:$0xf] %v501
        %v534 = vld [vmem:[%s2] sm:$0xff]
        %v535 = vld [vmem:[%s2 + $0x8] sm:$0xff]
        %v536 = vld [vmem:[%s2 + $0x10] sm:$0xff]
        %v537 = vld [vmem:[%s2 + $0x18] sm:$0xff]
        %v538 = vld [vmem:[%s2 + $0x20] sm:$0xff]
        %v539 = vld [vmem:[%s2 + $0x28] sm:$0xff]
        %v540 = vld [vmem:[%s2 + $0x30] sm:$0xff]
        %v541 = vld [vmem:[%s2 + $0x38] sm:$0xff]
        %v542 = vld [vmem:[%s2 + $0x40] sm:$0xff]
        %v543 = vld [vmem:[%s2 + $0x48] sm:$0xff]
        %v544 = vld [vmem:[%s2 + $0x50] sm:$0xff]
        %v545 = vld [vmem:[%s2 + $0x58] sm:$0xff]
        %v546 = vld [vmem:[%s2 + $0x60] sm:$0xff]
        %v547 = vld [vmem:[%s2 + $0x68] sm:$0xff]
        %v548 = vld [vmem:[%s2 + $0x70] sm:$0xff]
        %v549 = vld [vmem:[%s2 + $0x78] sm:$0xff]
        %550 = vmatprep.subr.mxu0 0.0
        %551 = vmatpush1.msra.mxu0 %v534
        %552 = vmatprep.subr.mxu0 0.0
        %553 = vmatpush1.msra.mxu0 %v535
        %554 = vmatprep.subr.mxu0 0.0
        %555 = vmatpush1.msra.mxu0 %v536
        %556 = vmatprep.subr.mxu0 0.0
        %557 = vmatpush1.msra.mxu0 %v537
        %558 = vmatprep.subr.mxu0 0.0
        %559 = vmatpush1.msra.mxu0 %v538
        %560 = vmatprep.subr.mxu0 0.0
        %561 = vmatpush1.msra.mxu0 %v539
        %562 = vmatprep.subr.mxu0 0.0
        %563 = vmatpush1.msra.mxu0 %v540
        %564 = vmatprep.subr.mxu0 0.0
        %565 = vmatpush1.msra.mxu0 %v541
        %566 = vmatprep.subr.mxu0 0.0
        %567 = vmatpush1.msra.mxu0 %v542
        %568 = vmatprep.subr.mxu0 0.0
        %569 = vmatpush1.msra.mxu0 %v543
        %570 = vmatprep.subr.mxu0 0.0
        %571 = vmatpush1.msra.mxu0 %v544
        %572 = vmatprep.subr.mxu0 0.0
        %573 = vmatpush1.msra.mxu0 %v545
        %574 = vmatprep.subr.mxu0 0.0
        %575 = vmatpush1.msra.mxu0 %v546
        %576 = vmatprep.subr.mxu0 0.0
        %577 = vmatpush1.msra.mxu0 %v547
        %578 = vmatprep.subr.mxu0 0.0
        %579 = vmatpush1.msra.mxu0 %v548
        %580 = vmatprep.subr.mxu0 0.0
        %581 = vmatpush1.msra.mxu0 %v549
        %582 = vmatprep.subr.mxu0 0.0
        %583 = vmatpush1.msra.mxu0 0.0
        %584 = vmatprep.subr.mxu0 0.0
        %585 = vmatpush1.msra.mxu0 0.0
        %586 = vmatprep.subr.mxu0 0.0
        %587 = vmatpush1.msra.mxu0 0.0
        %588 = vmatprep.subr.mxu0 0.0
        %589 = vmatpush1.msra.mxu0 0.0
        %590 = vmatprep.subr.mxu0 0.0
        %591 = vmatpush1.msra.mxu0 0.0
        %592 = vmatprep.subr.mxu0 0.0
        %593 = vmatpush1.msra.mxu0 0.0
        %594 = vmatprep.subr.mxu0 0.0
        %595 = vmatpush1.msra.mxu0 0.0
        %596 = vmatprep.subr.mxu0 0.0
        %597 = vmatpush1.msra.mxu0 0.0
        %598 = vmatprep.subr.mxu0 0.0
        %599 = vmatpush1.msra.mxu0 0.0
        %600 = vmatprep.subr.mxu0 0.0
        %601 = vmatpush1.msra.mxu0 0.0
        %602 = vmatprep.subr.mxu0 0.0
        %603 = vmatpush1.msra.mxu0 0.0
        %604 = vmatprep.subr.mxu0 0.0
        %605 = vmatpush1.msra.mxu0 0.0
        %606 = vmatprep.subr.mxu0 0.0
        %607 = vmatpush1.msra.mxu0 0.0
        %608 = vmatprep.subr.mxu0 0.0
        %609 = vmatpush1.msra.mxu0 0.0
        %610 = vmatprep.subr.mxu0 0.0
        %611 = vmatpush1.msra.mxu0 0.0
        %612 = vmatprep.subr.mxu0 0.0
        %613 = vmatpush1.msra.mxu0 0.0
        %614 = vmatprep.mubr.f32.mxu0 0.0
        %615 = vmatmul.mubr.f32.gmra.mrb[0].mxu0 %v392
        %v616 = vpop.f32.mrb[0].mxu0
        %v617 = vadd.f32 0.0, %v616
        %v618 = vpop.f32.mrb[0].mxu0
        %619 = vmatprep.mubr.f32.mxu0 0.0
        %620 = vmatmul.mubr.f32.gmra.mrb[0].mxu0 %v395
        %v621 = vpop.f32.mrb[0].mxu0
        %v622 = vadd.f32 0.0, %v621
        %v623 = vpop.f32.mrb[0].mxu0
        %624 = vmatprep.mubr.f32.mxu0 0.0
        %625 = vmatmul.mubr.f32.gmra.mrb[0].mxu0 %v400
        %v626 = vpop.f32.mrb[0].mxu0
        %v627 = vadd.f32 0.0, %v626
        %v628 = vpop.f32.mrb[0].mxu0
        %629 = vmatprep.mubr.f32.mxu0 0.0
        %630 = vmatmul.mubr.f32.gmra.mrb[0].mxu0 %v403
        %v631 = vpop.f32.mrb[0].mxu0
        %v632 = vadd.f32 0.0, %v631
        %v633 = vpop.f32.mrb[0].mxu0
        %634 = vmatprep.mubr.f32.mxu0 0.0
        %635 = vmatmul.mubr.f32.gmra.mrb[0].mxu0 %v408
        %v636 = vpop.f32.mrb[0].mxu0
        %v637 = vadd.f32 0.0, %v636
        %v638 = vpop.f32.mrb[0].mxu0
        %639 = vmatprep.mubr.f32.mxu0 0.0
        %640 = vmatmul.mubr.f32.gmra.mrb[0].mxu0 %v411
        %v641 = vpop.f32.mrb[0].mxu0
        %v642 = vadd.f32 0.0, %v641
        %v643 = vpop.f32.mrb[0].mxu0
        %644 = vmatprep.mubr.f32.mxu0 0.0
        %645 = vmatmul.mubr.f32.gmra.mrb[0].mxu0 %v416
        %v646 = vpop.f32.mrb[0].mxu0
        %v647 = vadd.f32 0.0, %v646
        %v648 = vpop.f32.mrb[0].mxu0
        %649 = vmatprep.mubr.f32.mxu0 0.0
        %650 = vmatmul.mubr.f32.gmra.mrb[0].mxu0 %v419
        %v651 = vpop.f32.mrb[0].mxu0
        %v652 = vadd.f32 0.0, %v651
        %v653 = vpop.f32.mrb[0].mxu0
        %654 = vmatprep.mubr.f32.mxu0 0.0
        %655 = vmatmul.mubr.f32.gmra.mrb[0].mxu0 %v424
        %v656 = vpop.f32.mrb[0].mxu0
        %v657 = vadd.f32 0.0, %v656
        %v658 = vpop.f32.mrb[0].mxu0
        %659 = vmatprep.mubr.f32.mxu0 0.0
        %660 = vmatmul.mubr.f32.gmra.mrb[0].mxu0 %v427
        %v661 = vpop.f32.mrb[0].mxu0
        %v662 = vadd.f32 0.0, %v661
        %v663 = vpop.f32.mrb[0].mxu0
        %664 = vmatprep.mubr.f32.mxu0 0.0
        %665 = vmatmul.mubr.f32.gmra.mrb[0].mxu0 %v432
        %v666 = vpop.f32.mrb[0].mxu0
        %v667 = vadd.f32 0.0, %v666
        %v668 = vpop.f32.mrb[0].mxu0
        %669 = vmatprep.mubr.f32.mxu0 0.0
        %670 = vmatmul.mubr.f32.gmra.mrb[0].mxu0 %v435
        %v671 = vpop.f32.mrb[0].mxu0
        %v672 = vadd.f32 0.0, %v671
        %v673 = vpop.f32.mrb[0].mxu0
        %674 = vmatprep.mubr.f32.mxu0 0.0
        %675 = vmatmul.mubr.f32.gmra.mrb[0].mxu0 %v440
        %v676 = vpop.f32.mrb[0].mxu0
        %v677 = vadd.f32 0.0, %v676
        %v678 = vpop.f32.mrb[0].mxu0
        %679 = vmatprep.mubr.f32.mxu0 0.0
        %680 = vmatmul.mubr.f32.gmra.mrb[0].mxu0 %v443
        %v681 = vpop.f32.mrb[0].mxu0
        %v682 = vadd.f32 0.0, %v681
        %v683 = vpop.f32.mrb[0].mxu0
        %684 = vmatprep.mubr.f32.mxu0 0.0
        %685 = vmatmul.mubr.f32.gmra.mrb[0].mxu0 %v448
        %v686 = vpop.f32.mrb[0].mxu0
        %v687 = vadd.f32 0.0, %v686
        %v688 = vpop.f32.mrb[0].mxu0
        %689 = vmatprep.mubr.f32.mxu0 0.0
        %690 = vmatmul.mubr.f32.gmra.mrb[0].mxu0 %v451
        %v691 = vpop.f32.mrb[0].mxu0
        %v692 = vadd.f32 0.0, %v691
        %v693 = vpop.f32.mrb[0].mxu0
        %694 = vdwg.mxu0
        %vm695 = vcmask 15360
        %696 = vst.msk [vmem:[%s226] sm:$0xff] %vm695, %v617
        %697 = vst.msk [vmem:[%s226 + $0x8] sm:$0xff] %vm695, %v622
        %698 = vst.msk [vmem:[%s226 + $0x10] sm:$0xff] %vm695, %v627
        %699 = vst.msk [vmem:[%s226 + $0x18] sm:$0xff] %vm695, %v632
        %700 = vst.msk [vmem:[%s226 + $0x20] sm:$0xff] %vm695, %v637
        %701 = vst.msk [vmem:[%s226 + $0x28] sm:$0xff] %vm695, %v642
        %702 = vst.msk [vmem:[%s226 + $0x30] sm:$0xff] %vm695, %v647
        %703 = vst.msk [vmem:[%s226 + $0x38] sm:$0xff] %vm695, %v652
        %704 = vst.msk [vmem:[%s226 + $0x40] sm:$0xff] %vm695, %v657
        %705 = vst.msk [vmem:[%s226 + $0x48] sm:$0xff] %vm695, %v662
        %706 = vst.msk [vmem:[%s226 + $0x50] sm:$0xff] %vm695, %v667
        %707 = vst.msk [vmem:[%s226 + $0x58] sm:$0xff] %vm695, %v672
        %708 = vst.msk [vmem:[%s226 + $0x60] sm:$0xff] %vm695, %v677
        %709 = vst.msk [vmem:[%s226 + $0x68] sm:$0xff] %vm695, %v682
        %710 = vst.msk [vmem:[%s226 + $0x70] sm:$0xff] %vm695, %v687
        %711 = vst.msk [vmem:[%s226 + $0x78] sm:$0xff] %vm695, %v692
        %s712 = sand.u32 %s96, 1
        %s713 = scalar_lea.sflag [#allocation4], %s712
        %s714 = sand.u32 %s96, 1
        %s715 = smul.addr %s714, 64
        %s716 = scalar_lea.vmem [#allocation5], %s715
        %s717 = smul.u32 16, %s20
        %p718 = scmp.lt.s32.totalorder %s717, 31
        %s719 = scalar_select %p718, %s717, 31
        %s720 = smul.addr %s719, 8
        %s721 = scalar_lea.vmem %s4, %s720
        // Predicated region
        $region37: #{tpu_custom_call.1} parent=31 // pred_check
          %p722 = pneg %p106
        $region38: #{tpu_custom_call.1} parent=31 // pred_check_branch
          %724 = sbr.rel (%p722) target = $region40
        $region39: #{tpu_custom_call.1} parent=31 // pred_region
          %s725 = smul.u32 16, %s20
          %s727 = ssub.s32 1024, 1024
          %728 = vsyncadd %s713, %s727
          %s729 = smul.addr %s725, 64
          %s730 = scalar_lea.hbm %s3, %s729
          %s731 = sshll.u32 %s716, 4
          %s732 = int_to_ptr.vmem [resolvable:$true] %s731
          %737 = dma.vmem_to_hbm [thread:$0]  %s732, 1024, %s730, %s713, 64, 64, 4
        $region40: #{tpu_custom_call.1} parent=31 // pred_fallthru
          _
        // Predicated region
        $region41: #{tpu_custom_call.1} parent=31 // pred_check
          %p738 = pneg %p132
        $region42: #{tpu_custom_call.1} parent=31 // pred_check_branch
          %740 = sbr.rel (%p738) target = $region44
        $region43: #{tpu_custom_call.1} parent=31 // pred_region
          %s741 = smul.u32 16, %s20
        $region44: #{tpu_custom_call.1} parent=31 // pred_fallthru
          _
      $region32: #{tpu_custom_call.1} parent=5 // pred_fallthru
        _
      %p742 = scmp.le.s32.totalorder 2, %s15
      // Predicated region
      $region45: #{tpu_custom_call.1} parent=5 // pred_check
        %p743 = pneg %p742
      $region46: #{tpu_custom_call.1} parent=5 // pred_check_branch
        %745 = sbr.rel (%p743) target = $region48
      $region47: #{tpu_custom_call.1} parent=5 // pred_region
        %s746 = ssub.s32 %s15, 2
        // Predicated region
        $region49: #{tpu_custom_call.1} parent=47 // pred_check
          %p747 = pneg %p112
        $region50: #{tpu_custom_call.1} parent=47 // pred_check_branch
          %749 = sbr.rel (%p747) target = $region52
        $region51: #{tpu_custom_call.1} parent=47 // pred_region
          %s750 = sand.u32 %s97, 1
          %s751 = scalar_lea.sflag [#allocation4], %s750
          %s752 = sand.u32 %s97, 1
          %s753 = smul.addr %s752, 64
          %s754 = scalar_lea.vmem [#allocation5], %s753
          %755 = dma.done %s751, 1024
        $region52: #{tpu_custom_call.1} parent=47 // pred_fallthru
          _
        // Predicated region
        $region53: #{tpu_custom_call.1} parent=47 // pred_check
          %p756 = pneg %p138
        $region54: #{tpu_custom_call.1} parent=47 // pred_check_branch
          %758 = sbr.rel (%p756) target = $region56
        $region55: #{tpu_custom_call.1} parent=47 // pred_region
          %s759 = smul.u32 16, %s21
          %p760 = scmp.lt.s32.totalorder %s759, 31
          %s761 = scalar_select %p760, %s759, 31
          %s762 = smul.addr %s761, 8
          %s763 = scalar_lea.vmem %s4, %s762
        $region56: #{tpu_custom_call.1} parent=47 // pred_fallthru
          _
      $region48: #{tpu_custom_call.1} parent=5 // pred_fallthru
        _
    $region6: #{tpu_custom_call.1} parent=1 // loop_footer
      %s19 = sadd.s32 1, %s15
    $region7: #{tpu_custom_call.1} parent=1 // loop_footer_branch
      %14 = sbr.rel target = $region3
    $region8: #{tpu_custom_call.1} parent=1 // loop_exit
      _
    %764 = vsyncpa [#allocation3], 1
    %s765 = scalar_lea.sflag [#allocation3], 1
    %766 = vsyncpa %s765, 1
    %767 = vsyncpa [#allocation4], 1
    %s768 = scalar_lea.sflag [#allocation4], 1
    %769 = vsyncpa %s768, 1

</llo_original>
